<compile_context>
chip_gen: v5e
topology: v5e:2x2
jax: 0.10.0
libtpu: 0.0.40
codegen_flags: <defaults>
</compile_context>

<pallas_src>
import functools
import math

import jax
import jax.numpy as jnp
from jax.experimental import pallas as pl
from jax.experimental.pallas import tpu as pltpu


# ---------------------------------------------------------------------------
# "Module init" helpers (run once, like the PyTorch buffer)
# ---------------------------------------------------------------------------
def make_sinusoidal_pe_table(d_model: int, max_len: int = 50) -> jnp.ndarray:
    """Deterministic table setup, mirrors the PyTorch __init__ exactly (fp32)."""
    assert d_model % 2 == 0, "d_model must be even (sin/cos interleave)"
    position = jnp.arange(max_len, dtype=jnp.float32)[:, None]            # (L, 1)
    div_term = jnp.exp(
        jnp.arange(0, d_model, 2, dtype=jnp.float32)
        * (-math.log(10000.0) / d_model)
    )                                                                      # (D/2,)
    args = position * div_term                                             # (L, D/2)
    pe = jnp.zeros((max_len, d_model), dtype=jnp.float32)
    pe = pe.at[:, 0::2].set(jnp.sin(args))
    pe = pe.at[:, 1::2].set(jnp.cos(args))
    return pe                                                              # (L, D)


def make_pe_flat(pe: jnp.ndarray, num_slots: int) -> jnp.ndarray:
    """Per-slot-expanded table, built ONCE at init (hoisted out of forward).

    Every slot of a frame shares that frame's PE row, so tiling along the
    folded (slot, dim) lane axis reproduces the torch `repeat(..., num_slots, ...)`.
    Kept in float32 for full-precision accumulation in the kernel.
    """
    return jnp.tile(pe, (1, num_slots))                                    # (L, N*D)


# ---------------------------------------------------------------------------
# Kernel
# ---------------------------------------------------------------------------
def _pe_add_kernel(pe_ref, x_ref, o_ref, *, seq_len: int):
    """Broadcast-add of the resident PE table to one batch tile (fp32 accum).

    pe_ref : (S_blk, ND)  float32, constant block index -> DMA'd once
    x_ref  : (TB, S, ND)  token tile (lane-dense: ND = num_slots * d_model)
    o_ref  : (TB, S, ND)  output tile
    """
    pe = pe_ref[:seq_len, :]                       # static slice: zero-cost view
    o_ref[...] = (x_ref[...].astype(jnp.float32) + pe).astype(o_ref.dtype)


# ---------------------------------------------------------------------------
# Wrapper
# ---------------------------------------------------------------------------
def _round_up(n: int, m: int) -> int:
    return ((n + m - 1) // m) * m


def _choose_batch_tile(batch: int, slab_bytes: int, total_bytes: int,
                       target_bytes: int) -> int:
    """Batch rows per block: ~target_bytes per x tile (v5e-safe at 2 MB)."""
    tb = int(max(1, target_bytes // max(slab_bytes, 1)))
    tb = min(batch, tb)
    # v7x has 2 TensorCores: if the whole (large) input landed in a single
    # grid step, split the batch axis so both cores get a parallel block.
    if tb == batch and batch >= 2 and total_bytes >= (1 << 20):
        tb = int(pl.cdiv(batch, 2))
    return tb


def sinusoidal_pe_forward(x: jnp.ndarray, pe_flat: jnp.ndarray, *,
                          min_pallas_bytes: int = 0,
                          donate_x: bool = False,
                          target_tile_bytes: int = 2 << 20) -> jnp.ndarray:
    """x: (B, Seq, Num_Slots, D); returns x + pe[:Seq] broadcast over batch & slots.

    pe_flat: (max_len, Num_Slots * D) float32, built once via make_pe_flat().
    donate_x: alias x's buffer to the output (only if the caller won't reuse x).
    min_pallas_bytes: below this total size, use the plain XLA fused add
        (a pallas_call has fixed launch cost; tiny adds are faster as fusions).
    """
    B, S, N, D = x.shape
    max_len, ND = pe_flat.shape
    assert ND == N * D, "pe_flat was built for a different (num_slots, d_model)"
    assert S <= max_len, "sequence longer than max_len of the PE table"

    total_bytes = B * S * ND * x.dtype.itemsize
    if total_bytes <= min_pallas_bytes:
        pe4 = pe_flat[:S].reshape(1, S, N, D)
        return (x.astype(jnp.float32) + pe4).astype(x.dtype)

    # Lane-dense view: slots folded into the lane dimension (free reshape).
    x2 = x.reshape(B, S, ND)
    slab_bytes = S * ND * x.dtype.itemsize                 # one batch row's slab

    TB = _choose_batch_tile(B, slab_bytes, total_bytes, target_tile_bytes)
    grid = (int(pl.cdiv(B, TB)),)

    # PE block: first ceil8(S) rows of the hoisted table (resident, DMA'd once).
    # Rounding keeps the sublane dim a multiple of 8 (or the full table).
    S_blk = min(max_len, _round_up(S, 8))

    kernel = functools.partial(_pe_add_kernel, seq_len=S)

    out = pl.pallas_call(
        kernel,
        out_shape=jax.ShapeDtypeStruct((B, S, ND), x.dtype),
        grid_spec=pltpu.PrefetchScalarGridSpec(
            num_scalar_prefetch=0,
            grid=grid,
            in_specs=[
                # Resident PE table: constant block index -> fetched once.
                pl.BlockSpec((S_blk, ND), lambda b: (0, 0)),
                # One batch tile of tokens (whole sequence in-block).
                pl.BlockSpec((TB, S, ND), lambda b: (b, 0, 0)),
            ],
            out_specs=pl.BlockSpec((TB, S, ND), lambda b: (b, 0, 0)),
        ),
        compiler_params=pltpu.CompilerParams(
            dimension_semantics=("parallel",),
        ),
        input_output_aliases=({1: 0} if donate_x else {}),
    )(pe_flat, x2)

    return out.reshape(B, S, N, D)


# ---------------------------------------------------------------------------
# Reference + self-test
# ---------------------------------------------------------------------------
def reference_forward(x: jnp.ndarray, pe: jnp.ndarray) -> jnp.ndarray:
    """Pure-JAX reference (same math as the PyTorch forward in eval mode)."""
    S = x.shape[1]
    return (x.astype(jnp.float32) + pe[None, :S, None, :]).astype(x.dtype)


if __name__ == "__main__":
    # (B, Seq_len, Num_Slots, Token_Dim)
    B, S, N, D = 2, 8, 4, 32
    max_len = 50

    key = jax.random.PRNGKey(0)
    x = jax.random.normal(key, (B, S, N, D), dtype=jnp.float32)

    # "Module init": build the table and its per-slot expansion exactly once.
    pe = make_sinusoidal_pe_table(D, max_len=max_len)
    pe_flat = make_pe_flat(pe, num_slots=N)

    y = sinusoidal_pe_forward(x, pe_flat)
    y = jax.block_until_ready(y)

    y_ref = reference_forward(x, pe)
    assert y.shape == (B, S, N, D)
    assert jnp.allclose(y, y_ref, atol=1e-6, rtol=1e-6), "mismatch vs reference"

    print("KERNEL_OK")
</pallas_src>

<mosaic_0001>
module attributes {stable_mosaic.version = 11 : i64} {
  func.func @_pe_add_kernel(%arg0: i32, %arg1: memref<8x128xf32, #tpu.memory_space<vmem>>, %arg2: memref<2x8x128xf32, #tpu.memory_space<vmem>>, %arg3: memref<2x8x128xf32, #tpu.memory_space<vmem>>) attributes {dimension_semantics = [#tpu.dimension_semantics<parallel>], iteration_bounds = array<i64: 1>, scalar_prefetch = 0 : i64, scratch_operands = 0 : i64, tpu.core_type = #tpu.core_type<tc>, window_params = [{transform_indices = @transform_0, window_bounds = array<i64: 8, 128>}, {transform_indices = @transform_1, window_bounds = array<i64: 2, 8, 128>}, {transform_indices = @transform_2, window_bounds = array<i64: 2, 8, 128>}]} {
    %c0 = arith.constant 0 : index
    %c0_0 = arith.constant 0 : index
    %0 = vector.load %arg1[%c0, %c0_0] : memref<8x128xf32, #tpu.memory_space<vmem>>, vector<8x128xf32>
    %c0_1 = arith.constant 0 : index
    %c0_2 = arith.constant 0 : index
    %c0_3 = arith.constant 0 : index
    %1 = vector.load %arg2[%c0_1, %c0_2, %c0_3] : memref<2x8x128xf32, #tpu.memory_space<vmem>>, vector<2x8x128xf32>
    %2 = vector.shape_cast %0 : vector<8x128xf32> to vector<1x8x128xf32>
    %3 = vector.broadcast %2 : vector<1x8x128xf32> to vector<2x8x128xf32>
    %4 = arith.addf %1, %3 : vector<2x8x128xf32>
    %c0_4 = arith.constant 0 : index
    %c0_5 = arith.constant 0 : index
    %c0_6 = arith.constant 0 : index
    %5 = vector.load %arg3[%c0_4, %c0_5, %c0_6] : memref<2x8x128xf32, #tpu.memory_space<vmem>>, vector<2x8x128xf32>
    tpu.vector_store %arg3[%c0_4, %c0_5, %c0_6], %4 {strides = array<i32>} : memref<2x8x128xf32, #tpu.memory_space<vmem>>, vector<2x8x128xf32>,
    return
  }
  func.func @transform_0(%arg0: i32) -> (i32, i32) {
    %c0_i32 = arith.constant 0 : i32
    %c0_i32_0 = arith.constant 0 : i32
    %c0_i32_1 = arith.constant 0 : i32
    return %c0_i32, %c0_i32_0 : i32, i32
  }
  func.func @transform_1(%arg0: i32) -> (i32, i32, i32) {
    %c0_i32 = arith.constant 0 : i32
    %c0_i32_0 = arith.constant 0 : i32
    %c0_i32_1 = arith.constant 0 : i32
    return %arg0, %c0_i32, %c0_i32_0 : i32, i32, i32
  }
  func.func @transform_2(%arg0: i32) -> (i32, i32, i32) {
    %c0_i32 = arith.constant 0 : i32
    %c0_i32_0 = arith.constant 0 : i32
    %c0_i32_1 = arith.constant 0 : i32
    return %arg0, %c0_i32, %c0_i32_0 : i32, i32, i32
  }
}

</mosaic_0001>

<llo_original>
// kernel: tpu_custom_call.1
$region0: #{tpu_custom_call.1}
  #allocation0 [shape = 'u32[]', space=smem, size = 0x4, offset = 0x4, fixed_abs, tag = 'smem constant byte address 0x4 - core index']
  #allocation1 [shape = 'u32[72,128]{1,0:T(1,128)}', space=vmem, size = 0x9000, scoped, tag = 'internal scratch']
  %s0 = inlined_call_operand.hbm [shape: f32[50,128], index: 0, kind: input, shape index: {}]
  %s1 = inlined_call_operand.hbm [shape: f32[2,8,128], index: 1, kind: input, shape index: {}]
  %s2 = inlined_call_operand.hbm [shape: f32[2,8,128], index: 2, kind: output, shape index: {}]
  %s3 = sld [smem:[#allocation0]]
  $region26: #{tpu_custom_call.1} parent=0
    _
  %s5 = ssub.s32 1, %s3
  %s6 = scalar_select 0, %s5, %s3
  $region1: #{tpu_custom_call.1} parent=0
    #allocation2 [shape = 'u8[4096]{0}', space=vmem, size = 0x1000, scoped, tag = 'input window, operand 0, single buffered']
    #allocation3 [shape = 's32[1]{0}', space=sflag, size = 0x4, scoped, tag = 'scoped memory for tpu_custom_call.1']
    #allocation4 [shape = 's32[1]{0}', space=sflag, size = 0x4, scoped, tag = 'scoped memory for tpu_custom_call.1']
    #allocation5 [shape = 'u8[8192]{0}', space=vmem, size = 0x2000, scoped, tag = 'input window, operand 1, single buffered']
    #allocation6 [shape = 's32[1]{0}', space=sflag, size = 0x4, scoped, tag = 'scoped memory for tpu_custom_call.1']
    #allocation7 [shape = 'u8[8192]{0}', space=vmem, size = 0x2000, scoped, tag = 'output window, operand 0, single buffered']
    %7 = vsyncpa [#allocation3], 0
    %8 = vsyncpa [#allocation6], 0
    %9 = vsyncpa [#allocation4], 0
    // Predicated region
    $region2: #{tpu_custom_call.1} parent=1 // pred_check
      _
    $region3: #{tpu_custom_call.1} parent=1 // pred_check_branch
      %11 = sbr.rel (0) target = $region5
    $region4: #{tpu_custom_call.1} parent=1 // pred_region
      %13 = vsyncadd [#allocation3], 0
      %s15 = sshll.u32 %s0, 4
      %s16 = int_to_ptr.hbm [resolvable:$true] %s15
      %s17 = sshll.u32 [#allocation2], 4
      %s18 = int_to_ptr.vmem [resolvable:$true] %s17
      %20 = dma.hbm_to_vmem [thread:$0]  %s16, 128, %s18, [#allocation3]
    $region5: #{tpu_custom_call.1} parent=1 // pred_fallthru
      _
    // Predicated region
    $region6: #{tpu_custom_call.1} parent=1 // pred_check
      _
    $region7: #{tpu_custom_call.1} parent=1 // pred_check_branch
      %22 = sbr.rel (0) target = $region9
    $region8: #{tpu_custom_call.1} parent=1 // pred_region
      %24 = vsyncadd [#allocation6], 0
      %s25 = sshll.u32 %s1, 4
      %s26 = int_to_ptr.hbm [resolvable:$true] %s25
      %s27 = sshll.u32 [#allocation5], 4
      %s28 = int_to_ptr.vmem [resolvable:$true] %s27
      %33 = dma.hbm_to_vmem [thread:$0]  %s26, 256, %s28, [#allocation6], 128, 128, 8
    $region9: #{tpu_custom_call.1} parent=1 // pred_fallthru
      _
    // Predicated region
    $region10: #{tpu_custom_call.1} parent=1 // pred_check
      _
    $region11: #{tpu_custom_call.1} parent=1 // pred_check_branch
      %35 = sbr.rel (0) target = $region13
    $region12: #{tpu_custom_call.1} parent=1 // pred_region
      %37 = dma.done [#allocation3], 128
    $region13: #{tpu_custom_call.1} parent=1 // pred_fallthru
      _
    // Predicated region
    $region14: #{tpu_custom_call.1} parent=1 // pred_check
      _
    $region15: #{tpu_custom_call.1} parent=1 // pred_check_branch
      %39 = sbr.rel (0) target = $region17
    $region16: #{tpu_custom_call.1} parent=1 // pred_region
      %41 = dma.done [#allocation6], 256
    $region17: #{tpu_custom_call.1} parent=1 // pred_fallthru
      _
    %v42 = vld [vmem:[#allocation2] sm:$0xff]
    %v43 = vld [vmem:[#allocation5] sm:$0xff]
    %v44 = vld [vmem:[#allocation5 + $0x8] sm:$0xff]
    %v45 = vadd.f32 %v43, %v42
    %v46 = vadd.f32 %v44, %v42
    %47 = vst [vmem:[#allocation7] sm:$0xff] %v45
    %48 = vst [vmem:[#allocation7 + $0x8] sm:$0xff] %v46
    // Predicated region
    $region18: #{tpu_custom_call.1} parent=1 // pred_check
      _
    $region19: #{tpu_custom_call.1} parent=1 // pred_check_branch
      %50 = sbr.rel (0) target = $region21
    $region20: #{tpu_custom_call.1} parent=1 // pred_region
      %52 = vsyncadd [#allocation4], 0
      %s53 = sshll.u32 [#allocation7], 4
      %s54 = int_to_ptr.vmem [resolvable:$true] %s53
      %s55 = sshll.u32 %s2, 4
      %s56 = int_to_ptr.hbm [resolvable:$true] %s55
      %61 = dma.vmem_to_hbm [thread:$0]  %s54, 256, %s56, [#allocation4], 128, 128, 8
    $region21: #{tpu_custom_call.1} parent=1 // pred_fallthru
      _
    // Predicated region
    $region22: #{tpu_custom_call.1} parent=1 // pred_check
      _
    $region23: #{tpu_custom_call.1} parent=1 // pred_check_branch
      %63 = sbr.rel (0) target = $region25
    $region24: #{tpu_custom_call.1} parent=1 // pred_region
      %65 = dma.done [#allocation4], 256
    $region25: #{tpu_custom_call.1} parent=1 // pred_fallthru
      _
    %66 = vsyncpa [#allocation3], 1
    %67 = vsyncpa [#allocation6], 1
    %68 = vsyncpa [#allocation4], 1

</llo_original>
